<compile_context>
chip_gen: v5e
topology: v5e:2x2
jax: 0.10.0
libtpu: 0.0.40
codegen_flags: <defaults>
</compile_context>

<pallas_src>
import functools
import math

import jax
import jax.numpy as jnp
from jax import lax
from jax.experimental import pallas as pl
from jax.experimental.pallas import tpu as pltpu


def _round_up(n, m):
    return ((n + m - 1) // m) * m


def _device_kind():
    try:
        return jax.devices()[0].device_kind.lower()
    except Exception:
        return ""


def _sinkhorn_kernel(x_ref, y_ref, cost_ref, pi_ref, c_ref, *,
                     eps, max_iter, p1, p2, bt, use_bf16_exp):
    """Bt batch elements per grid step.

    x_ref: (Bt, P1p, D), y_ref: (Bt, P2p, D),
    cost_ref: (Bt, 1, 128), pi_ref / c_ref: (Bt, P1p, P2p).
    """
    xb = x_ref[...]                                   # (Bt, P1p, D) f32
    yb = y_ref[...]                                   # (Bt, P2p, D) f32
    _, P1p, _ = xb.shape
    P2p = yb.shape[1]

    inv_eps = jnp.float32(1.0 / eps)
    eps_f = jnp.float32(eps)
    NEG = jnp.float32(-1e30)
    thresh = jnp.float32(0.1)

    need_row_mask = (p1 != P1p)
    need_col_mask = (p2 != P2p)
    row_valid = lax.broadcasted_iota(jnp.int32, (1, P1p, 1), 1) < p1
    col_valid = lax.broadcasted_iota(jnp.int32, (1, 1, P2p), 2) < p2

    # ---- cost matrix on the MXU: C_ij = |x_i|^2 + |y_j|^2 - 2 x_i . y_j ----
    xx = jnp.sum(xb * xb, axis=-1, keepdims=True)               # (Bt, P1p, 1)
    yy_row = jnp.sum(yb * yb, axis=-1)[:, None, :]              # (Bt, 1, P2p)
    xyT = jnp.einsum('bid,bjd->bij', xb, yb,
                     preferred_element_type=jnp.float32)        # (Bt,P1p,P2p)
    C = jnp.maximum(xx + yy_row - 2.0 * xyT, 0.0)

    # Store C now; it is not kept live across the while_loop (read back later).
    c_ref[...] = C

    negC = -C * inv_eps                                         # -C/eps, hoisted
    # Bake the padding mask into negC once: padded rows/cols become -1e30, so
    # they drop out of both logsumexps and give pi == 0 with no extra selects.
    if need_row_mask or need_col_mask:
        negC = jnp.where(jnp.logical_and(row_valid, col_valid), negC, NEG)

    log_mu = jnp.float32(math.log(1.0 / p1 + 1e-8))
    log_nu = jnp.float32(math.log(1.0 / p2 + 1e-8))

    def _exp(z):
        if use_bf16_exp:   # v6e / v7x EUP bf16; f32 accumulation outside
            return jnp.exp(z.astype(jnp.bfloat16)).astype(jnp.float32)
        return jnp.exp(z)

    def lse_cols(m):       # logsumexp over lanes (j / P2 axis) -> (Bt, P1p, 1)
        mx = jnp.max(m, axis=-1, keepdims=True)
        return jnp.log(jnp.sum(_exp(m - mx), axis=-1, keepdims=True)) + mx

    def lse_rows(m):       # logsumexp over sublanes (i / P1 axis) -> (Bt,1,P2p)
        mx = jnp.max(m, axis=-2, keepdims=True)
        return jnp.log(jnp.sum(_exp(m - mx), axis=-2, keepdims=True)) + mx

    # a = u/eps, b = v/eps.  `a` factors out of lse_cols and `b` out of
    # lse_rows, so the iteration body needs only one broadcast add per lse.
    def cond(carry):
        it, _, _, err = carry
        return jnp.logical_and(it < max_iter, err >= thresh)

    def body(carry):
        it, a, b, _ = carry
        a_new = log_mu - lse_cols(negC + b)                     # (Bt, P1p, 1)
        if need_row_mask:
            a_new = jnp.where(row_valid, a_new, 0.0)            # keep err finite
        b_new = log_nu - lse_rows(negC + a_new)                 # (Bt, 1, P2p)
        if need_col_mask:
            b_new = jnp.where(col_valid, b_new, 0.0)            # keep padded pi 0
        # err = mean_b sum_i |u_new - u_old| = eps/Bt * sum |a_new - a|
        err = (eps_f / bt) * jnp.sum(jnp.abs(a_new - a))
        return it + jnp.int32(1), a_new, b_new, err

    a0 = jnp.zeros((bt, P1p, 1), jnp.float32)
    b0 = jnp.zeros((bt, 1, P2p), jnp.float32)
    _, a, b, _ = lax.while_loop(cond, body,
                                (jnp.int32(0), a0, b0, jnp.float32(1e30)))

    # ---- transport plan and cost -------------------------------------------
    pi = jnp.exp(negC + a + b)        # padded entries: exp(-1e30 + 0 + 0) == 0
    pi_ref[...] = pi
    Cr = c_ref[...]                   # read C back from its output block
    s = jnp.sum(pi * Cr, axis=-1, keepdims=True)                # (Bt, P1p, 1)
    total = jnp.sum(s, axis=-2, keepdims=True)                  # (Bt, 1, 1)
    cost_ref[...] = jnp.broadcast_to(total, (bt, 1, 128))       # lane-dense


def _pick_bt(B, P1p, P2p, vmem_budget_bytes):
    # Rough per-packed-element footprint: negC + double-buffered pi/C output
    # blocks + a couple of loop temporaries, all f32 (P1p, P2p).
    per_elem = 8 * P1p * P2p * 4
    max_pack = max(1, vmem_budget_bytes // max(per_elem, 1))
    bt = 1
    for d in range(1, B + 1):
        if B % d == 0 and d <= max_pack:
            bt = d
    return bt


def sinkhorn_distance(x, y, *, eps=0.1, max_iter=50, reduction='none',
                      use_bf16_exp=None):
    """Pallas implementation of SinkhornDistance.forward (batched inputs).

    x: (B, P1, D), y: (B, P2, D).  Returns (cost, pi, C) like the PyTorch
    module: cost (B,), pi / C (B, P1, P2).
    """
    # TODO(synk): PyTorch's `.squeeze()` on mu/nu changes shapes when B == 1;
    # this wrapper keeps an explicit batch dim (shapes stay (B, ...)).
    x = jnp.asarray(x, jnp.float32)
    y = jnp.asarray(y, jnp.float32)
    B, P1, D = x.shape
    _, P2, _ = y.shape

    kind = _device_kind()
    if use_bf16_exp is None:
        # bf16 EUP exists on v6e/v7x; keep f32 on v5e and older/unknown chips.
        use_bf16_exp = ('v6' in kind) or ('v7' in kind)
    if 'v7' in kind:
        vmem_limit = 48 * 1024 * 1024      # v7x: 64 MiB physical per TC
    elif ('v6' in kind) or ('v5' in kind):
        vmem_limit = 96 * 1024 * 1024      # 128 MiB physical VMEM
    else:
        vmem_limit = 32 * 1024 * 1024

    # Lane-dense padding: P2 (lane axis of C/pi) -> x128, P1 (sublanes) -> x8.
    # D is not padded: every block spans the full feature axis.
    P1p = _round_up(P1, 8)
    P2p = _round_up(P2, 128)
    xp = x if P1p == P1 else jnp.pad(x, ((0, 0), (0, P1p - P1), (0, 0)))
    yp = y if P2p == P2 else jnp.pad(y, ((0, 0), (0, P2p - P2), (0, 0)))

    # Pack Bt batch elements per grid step (Bt divides B, fits VMEM budget).
    Bt = _pick_bt(B, P1p, P2p, vmem_limit // 2)
    num_blocks = B // Bt

    kernel = functools.partial(
        _sinkhorn_kernel, eps=float(eps), max_iter=int(max_iter),
        p1=int(P1), p2=int(P2), bt=int(Bt), use_bf16_exp=bool(use_bf16_exp))

    cost3, pi_p, c_p = pl.pallas_call(
        kernel,
        out_shape=(
            jax.ShapeDtypeStruct((B, 1, 128), jnp.float32),
            jax.ShapeDtypeStruct((B, P1p, P2p), jnp.float32),
            jax.ShapeDtypeStruct((B, P1p, P2p), jnp.float32),
        ),
        grid=(num_blocks,),
        in_specs=[
            pl.BlockSpec((Bt, P1p, D), lambda g: (g, 0, 0)),
            pl.BlockSpec((Bt, P2p, D), lambda g: (g, 0, 0)),
        ],
        out_specs=(
            pl.BlockSpec((Bt, 1, 128), lambda g: (g, 0, 0)),
            pl.BlockSpec((Bt, P1p, P2p), lambda g: (g, 0, 0)),
            pl.BlockSpec((Bt, P1p, P2p), lambda g: (g, 0, 0)),
        ),
        compiler_params=pltpu.CompilerParams(
            dimension_semantics=("parallel",),
            vmem_limit_bytes=vmem_limit,
        ),
    )(xp, yp)
    # TODO(synk): for very large P1p*P2p blocks (> ~8 MiB) on v7x, tile P2
    # with an inner loop / single-buffer the pi & C outputs.

    cost = cost3[:, 0, 0]
    pi = pi_p[:, :P1, :P2]
    C = c_p[:, :P1, :P2]
    if reduction == 'mean':
        cost = jnp.mean(cost)
    elif reduction == 'sum':
        cost = jnp.sum(cost)
    return cost, pi, C


if __name__ == "__main__":
    key = jax.random.PRNGKey(0)
    kx, ky = jax.random.split(key)
    B, P1, P2, D = 2, 16, 16, 8
    x = jax.random.normal(kx, (B, P1, D), dtype=jnp.float32)
    y = jax.random.normal(ky, (B, P2, D), dtype=jnp.float32)

    cost, pi, C = sinkhorn_distance(x, y, eps=0.1, max_iter=50,
                                    reduction='none')
    jax.block_until_ready((cost, pi, C))

    assert cost.shape == (B,) and pi.shape == (B, P1, P2) and C.shape == (B, P1, P2)
    # cost-matrix parity against the direct |x - y|^2 formulation (f32 path)
    C_ref = jnp.sum(jnp.abs(x[:, :, None, :] - y[:, None, :, :]) ** 2, axis=-1)
    assert bool(jnp.max(jnp.abs(C - C_ref)) < 1e-3)
    assert bool(jnp.all(jnp.isfinite(cost)))
    assert bool(jnp.all(pi >= 0.0))
    # transport plan mass: column marginals are renormalized to nu every
    # iteration, so total mass ~ 1 (loose tolerance covers bf16-exp chips)
    assert bool(jnp.max(jnp.abs(jnp.sum(pi, axis=(1, 2)) - 1.0)) < 0.05)
    print("KERNEL_OK")
</pallas_src>

<mosaic_0001>
module attributes {stable_mosaic.version = 11 : i64} {
  func.func @_sinkhorn_kernel(%arg0: i32, %arg1: memref<2x16x8xf32, #tpu.memory_space<vmem>>, %arg2: memref<2x128x8xf32, #tpu.memory_space<vmem>>, %arg3: memref<2x1x128xf32, #tpu.memory_space<vmem>>, %arg4: memref<2x16x128xf32, #tpu.memory_space<vmem>>, %arg5: memref<2x16x128xf32, #tpu.memory_space<vmem>>) attributes {dimension_semantics = [#tpu.dimension_semantics<parallel>], iteration_bounds = array<i64: 1>, scalar_prefetch = 0 : i64, scratch_operands = 0 : i64, tpu.core_type = #tpu.core_type<tc>, window_params = [{transform_indices = @transform_0, window_bounds = array<i64: 2, 16, 8>}, {transform_indices = @transform_1, window_bounds = array<i64: 2, 128, 8>}, {transform_indices = @transform_2, window_bounds = array<i64: 2, 1, 128>}, {transform_indices = @transform_3, window_bounds = array<i64: 2, 16, 128>}, {transform_indices = @transform_4, window_bounds = array<i64: 2, 16, 128>}]} {
    %c0 = arith.constant 0 : index
    %c0_0 = arith.constant 0 : index
    %c0_1 = arith.constant 0 : index
    %0 = vector.load %arg1[%c0, %c0_0, %c0_1] : memref<2x16x8xf32, #tpu.memory_space<vmem>>, vector<2x16x8xf32>
    %c0_2 = arith.constant 0 : index
    %c0_3 = arith.constant 0 : index
    %c0_4 = arith.constant 0 : index
    %1 = vector.load %arg2[%c0_2, %c0_3, %c0_4] : memref<2x128x8xf32, #tpu.memory_space<vmem>>, vector<2x128x8xf32>
    %2 = tpu.iota {dimensions = array<i32: 1>} : vector<1x16x1xi32>
    %c16_i32 = arith.constant 16 : i32
    %3 = vector.broadcast %c16_i32 : i32 to vector<1x16x1xi32>
    %4 = arith.cmpi slt, %2, %3 : vector<1x16x1xi32>
    %5 = tpu.iota {dimensions = array<i32: 2>} : vector<1x1x128xi32>
    %c16_i32_5 = arith.constant 16 : i32
    %6 = vector.broadcast %c16_i32_5 : i32 to vector<1x1x128xi32>
    %7 = arith.cmpi slt, %5, %6 : vector<1x1x128xi32>
    %8 = arith.mulf %0, %0 : vector<2x16x8xf32>
    %cst = arith.constant dense<0.000000e+00> : vector<2x16xf32>
    %9 = vector.multi_reduction <add>, %8, %cst [2] : vector<2x16x8xf32> to vector<2x16xf32>
    %10 = vector.shape_cast %9 : vector<2x16xf32> to vector<2x16x1xf32>
    %11 = arith.mulf %1, %1 : vector<2x128x8xf32>
    %cst_6 = arith.constant dense<0.000000e+00> : vector<2x128xf32>
    %12 = vector.multi_reduction <add>, %11, %cst_6 [2] : vector<2x128x8xf32> to vector<2x128xf32>
    %13 = vector.shape_cast %12 : vector<2x128xf32> to vector<2x1x128xf32>
    "tpu.trace_start"() <{level = 10 : i32, message = "bid,bjd->bij"}> : () -> ()
    %cst_7 = arith.constant dense<0.000000e+00> : vector<2x16x128xf32>
    %14 = tpu.matmul %0, %1, %cst_7 {dimension_numbers = #tpu.dot_dimension_numbers<[2], [2], [1], [1], [0, 0, 0, 1, 1, 1], [0], [0]>} : vector<2x16x8xf32>, vector<2x128x8xf32>, vector<2x16x128xf32> -> vector<2x16x128xf32>
    "tpu.trace_stop"() : () -> ()
    %15 = vector.broadcast %10 : vector<2x16x1xf32> to vector<2x16x128xf32>
    %16 = vector.broadcast %13 : vector<2x1x128xf32> to vector<2x16x128xf32>
    %17 = arith.addf %15, %16 : vector<2x16x128xf32>
    %cst_8 = arith.constant 2.000000e+00 : f32
    %18 = vector.broadcast %cst_8 : f32 to vector<2x16x128xf32>
    %19 = arith.mulf %18, %14 : vector<2x16x128xf32>
    %20 = arith.subf %17, %19 : vector<2x16x128xf32>
    %cst_9 = arith.constant 0.000000e+00 : f32
    %21 = vector.broadcast %cst_9 : f32 to vector<2x16x128xf32>
    %22 = arith.maximumf %20, %21 : vector<2x16x128xf32>
    %c0_10 = arith.constant 0 : index
    %c0_11 = arith.constant 0 : index
    %c0_12 = arith.constant 0 : index
    %23 = vector.load %arg5[%c0_10, %c0_11, %c0_12] : memref<2x16x128xf32, #tpu.memory_space<vmem>>, vector<2x16x128xf32>
    tpu.vector_store %arg5[%c0_10, %c0_11, %c0_12], %22 {strides = array<i32>} : memref<2x16x128xf32, #tpu.memory_space<vmem>>, vector<2x16x128xf32>,
    %cst_13 = arith.constant 0.000000e+00 : f32
    %24 = vector.broadcast %cst_13 : f32 to vector<2x16x128xf32>
    %25 = arith.subf %24, %22 : vector<2x16x128xf32>
    %cst_14 = arith.constant 1.000000e+01 : f32
    %26 = vector.broadcast %cst_14 : f32 to vector<2x16x128xf32>
    %27 = arith.mulf %25, %26 : vector<2x16x128xf32>
    %28 = vector.broadcast %4 : vector<1x16x1xi1> to vector<1x16x128xi1>
    %29 = vector.broadcast %7 : vector<1x1x128xi1> to vector<1x16x128xi1>
    %30 = arith.andi %28, %29 : vector<1x16x128xi1>
    %cst_15 = arith.constant -1.000000e+30 : f32
    %31 = vector.shape_cast %30 : vector<1x16x128xi1> to vector<1x16x128xi1>
    %32 = vector.broadcast %31 : vector<1x16x128xi1> to vector<2x16x128xi1>
    %33 = vector.broadcast %cst_15 : f32 to vector<2x16x128xf32>
    %34 = arith.select %32, %27, %33 : vector<2x16x128xi1>, vector<2x16x128xf32>
    %cst_16 = arith.constant 0.000000e+00 : f32
    %35 = vector.broadcast %cst_16 : f32 to vector<2x16x1xf32>
    %cst_17 = arith.constant 0.000000e+00 : f32
    %36 = vector.broadcast %cst_17 : f32 to vector<2x1x128xf32>
    %cst_18 = arith.constant 1.000000e-01 : f32
    %cst_19 = arith.constant -2.77258849 : f32
    %cst_20 = arith.constant -2.77258849 : f32
    %cst_21 = arith.constant 1.000000e-01 : f32
    %c0_i32 = arith.constant 0 : i32
    %cst_22 = arith.constant 1.000000e+30 : f32
    %37:4 = scf.while (%arg6 = %c0_i32, %arg7 = %35, %arg8 = %36, %arg9 = %cst_22) : (i32, vector<2x16x1xf32>, vector<2x1x128xf32>, f32) -> (i32, vector<2x16x1xf32>, vector<2x1x128xf32>, f32) {
      %c50_i32 = arith.constant 50 : i32
      %53 = arith.cmpi slt, %arg6, %c50_i32 : i32
      %54 = arith.cmpf oge, %arg9, %cst_18 : f32
      %55 = arith.andi %53, %54 : i1
      scf.condition(%55) %arg6, %arg7, %arg8, %arg9 : i32, vector<2x16x1xf32>, vector<2x1x128xf32>, f32
    } do {
    ^bb0(%arg6: i32, %arg7: vector<2x16x1xf32>, %arg8: vector<2x1x128xf32>, %arg9: f32):
      %53 = vector.broadcast %arg8 : vector<2x1x128xf32> to vector<2x16x128xf32>
      %54 = arith.addf %34, %53 : vector<2x16x128xf32>
      %cst_34 = arith.constant dense<0xFF800000> : vector<2x16xf32>
      %55 = vector.multi_reduction <maximumf>, %54, %cst_34 [2] : vector<2x16x128xf32> to vector<2x16xf32>
      %56 = vector.shape_cast %55 : vector<2x16xf32> to vector<2x16x1xf32>
      %57 = vector.broadcast %56 : vector<2x16x1xf32> to vector<2x16x128xf32>
      %58 = arith.subf %54, %57 : vector<2x16x128xf32>
      %59 = math.exp %58 : vector<2x16x128xf32>
      %cst_35 = arith.constant dense<0.000000e+00> : vector<2x16xf32>
      %60 = vector.multi_reduction <add>, %59, %cst_35 [2] : vector<2x16x128xf32> to vector<2x16xf32>
      %61 = vector.shape_cast %60 : vector<2x16xf32> to vector<2x16x1xf32>
      %62 = math.log %61 : vector<2x16x1xf32>
      %63 = arith.addf %62, %56 : vector<2x16x1xf32>
      %64 = vector.broadcast %cst_19 : f32 to vector<2x16x1xf32>
      %65 = arith.subf %64, %63 : vector<2x16x1xf32>
      %66 = vector.broadcast %65 : vector<2x16x1xf32> to vector<2x16x128xf32>
      %67 = arith.addf %34, %66 : vector<2x16x128xf32>
      %cst_36 = arith.constant dense<0xFF800000> : vector<2x128xf32>
      %68 = vector.multi_reduction <maximumf>, %67, %cst_36 [1] : vector<2x16x128xf32> to vector<2x128xf32>
      %69 = vector.shape_cast %68 : vector<2x128xf32> to vector<2x1x128xf32>
      %70 = vector.broadcast %69 : vector<2x1x128xf32> to vector<2x16x128xf32>
      %71 = arith.subf %67, %70 : vector<2x16x128xf32>
      %72 = math.exp %71 : vector<2x16x128xf32>
      %cst_37 = arith.constant dense<0.000000e+00> : vector<2x128xf32>
      %73 = vector.multi_reduction <add>, %72, %cst_37 [1] : vector<2x16x128xf32> to vector<2x128xf32>
      %74 = vector.shape_cast %73 : vector<2x128xf32> to vector<2x1x128xf32>
      %75 = math.log %74 : vector<2x1x128xf32>
      %76 = arith.addf %75, %69 : vector<2x1x128xf32>
      %77 = vector.broadcast %cst_20 : f32 to vector<2x1x128xf32>
      %78 = arith.subf %77, %76 : vector<2x1x128xf32>
      %cst_38 = arith.constant 0.000000e+00 : f32
      %79 = vector.shape_cast %7 : vector<1x1x128xi1> to vector<1x1x128xi1>
      %80 = vector.broadcast %79 : vector<1x1x128xi1> to vector<2x1x128xi1>
      %81 = vector.broadcast %cst_38 : f32 to vector<2x1x128xf32>
      %82 = arith.select %80, %78, %81 : vector<2x1x128xi1>, vector<2x1x128xf32>
      %cst_39 = arith.constant 2.000000e+00 : f32
      %83 = arith.divf %cst_21, %cst_39 : f32
      %84 = arith.subf %65, %arg7 : vector<2x16x1xf32>
      %85 = math.absf %84 : vector<2x16x1xf32>
      %86 = vector.shape_cast %85 : vector<2x16x1xf32> to vector<1x2x16x1xf32>
      %cst_40 = arith.constant dense<0.000000e+00> : vector<1xf32>
      %87 = vector.multi_reduction <add>, %86, %cst_40 [1, 2, 3] : vector<1x2x16x1xf32> to vector<1xf32>
      %88 = vector.shape_cast %87 : vector<1xf32> to vector<1x1x1x1xf32>
      %89 = vector.extract %88[0, 0, 0, 0] : f32 from vector<1x1x1x1xf32>
      %90 = arith.mulf %83, %89 : f32
      %c1_i32 = arith.constant 1 : i32
      %91 = arith.addi %arg6, %c1_i32 : i32
      scf.yield %91, %65, %82, %90 : i32, vector<2x16x1xf32>, vector<2x1x128xf32>, f32
    }
    %38 = vector.broadcast %37#1 : vector<2x16x1xf32> to vector<2x16x128xf32>
    %39 = arith.addf %34, %38 : vector<2x16x128xf32>
    %40 = vector.broadcast %37#2 : vector<2x1x128xf32> to vector<2x16x128xf32>
    %41 = arith.addf %39, %40 : vector<2x16x128xf32>
    %42 = math.exp %41 : vector<2x16x128xf32>
    %c0_23 = arith.constant 0 : index
    %c0_24 = arith.constant 0 : index
    %c0_25 = arith.constant 0 : index
    %43 = vector.load %arg4[%c0_23, %c0_24, %c0_25] : memref<2x16x128xf32, #tpu.memory_space<vmem>>, vector<2x16x128xf32>
    tpu.vector_store %arg4[%c0_23, %c0_24, %c0_25], %42 {strides = array<i32>} : memref<2x16x128xf32, #tpu.memory_space<vmem>>, vector<2x16x128xf32>,
    %c0_26 = arith.constant 0 : index
    %c0_27 = arith.constant 0 : index
    %c0_28 = arith.constant 0 : index
    %44 = vector.load %arg5[%c0_26, %c0_27, %c0_28] : memref<2x16x128xf32, #tpu.memory_space<vmem>>, vector<2x16x128xf32>
    %45 = arith.mulf %42, %44 : vector<2x16x128xf32>
    %cst_29 = arith.constant dense<0.000000e+00> : vector<2x16xf32>
    %46 = vector.multi_reduction <add>, %45, %cst_29 [2] : vector<2x16x128xf32> to vector<2x16xf32>
    %47 = vector.shape_cast %46 : vector<2x16xf32> to vector<2x16x1xf32>
    %cst_30 = arith.constant dense<0.000000e+00> : vector<2x1xf32>
    %48 = vector.multi_reduction <add>, %47, %cst_30 [1] : vector<2x16x1xf32> to vector<2x1xf32>
    %49 = vector.shape_cast %48 : vector<2x1xf32> to vector<2x1x1xf32>
    %50 = vector.shape_cast %49 : vector<2x1x1xf32> to vector<2x1x1xf32>
    %51 = vector.broadcast %50 : vector<2x1x1xf32> to vector<2x1x128xf32>
    %c0_31 = arith.constant 0 : index
    %c0_32 = arith.constant 0 : index
    %c0_33 = arith.constant 0 : index
    %52 = vector.load %arg3[%c0_31, %c0_32, %c0_33] : memref<2x1x128xf32, #tpu.memory_space<vmem>>, vector<2x1x128xf32>
    tpu.vector_store %arg3[%c0_31, %c0_32, %c0_33], %51 {strides = array<i32>} : memref<2x1x128xf32, #tpu.memory_space<vmem>>, vector<2x1x128xf32>,
    return
  }
  func.func @transform_0(%arg0: i32) -> (i32, i32, i32) {
    %c0_i32 = arith.constant 0 : i32
    %c0_i32_0 = arith.constant 0 : i32
    %c0_i32_1 = arith.constant 0 : i32
    return %arg0, %c0_i32, %c0_i32_0 : i32, i32, i32
  }
  func.func @transform_1(%arg0: i32) -> (i32, i32, i32) {
    %c0_i32 = arith.constant 0 : i32
    %c0_i32_0 = arith.constant 0 : i32
    %c0_i32_1 = arith.constant 0 : i32
    return %arg0, %c0_i32, %c0_i32_0 : i32, i32, i32
  }
  func.func @transform_2(%arg0: i32) -> (i32, i32, i32) {
    %c0_i32 = arith.constant 0 : i32
    %c0_i32_0 = arith.constant 0 : i32
    %c0_i32_1 = arith.constant 0 : i32
    return %arg0, %c0_i32, %c0_i32_0 : i32, i32, i32
  }
  func.func @transform_3(%arg0: i32) -> (i32, i32, i32) {
    %c0_i32 = arith.constant 0 : i32
    %c0_i32_0 = arith.constant 0 : i32
    %c0_i32_1 = arith.constant 0 : i32
    return %arg0, %c0_i32, %c0_i32_0 : i32, i32, i32
  }
  func.func @transform_4(%arg0: i32) -> (i32, i32, i32) {
    %c0_i32 = arith.constant 0 : i32
    %c0_i32_0 = arith.constant 0 : i32
    %c0_i32_1 = arith.constant 0 : i32
    return %arg0, %c0_i32, %c0_i32_0 : i32, i32, i32
  }
}

</mosaic_0001>

<llo_original>
// kernel: tpu_custom_call.1
$region0: #{tpu_custom_call.1}
  #allocation0 [shape = 'u32[]', space=smem, size = 0x4, offset = 0x4, fixed_abs, tag = 'smem constant byte address 0x4 - core index']
  #allocation1 [shape = 'u32[72,128]{1,0:T(1,128)}', space=vmem, size = 0x9000, scoped, tag = 'internal scratch']
  %s0 = inlined_call_operand.vmem [shape: f32[2,16,8], index: 0, kind: input, shape index: {}]
  %s1 = inlined_call_operand.vmem [shape: f32[2,128,8], index: 1, kind: input, shape index: {}]
  %s2 = inlined_call_operand.hbm [shape: f32[2,1,128], index: 2, kind: output, shape index: {0}]
  %s3 = inlined_call_operand.hbm [shape: f32[2,16,128], index: 3, kind: output, shape index: {1}]
  %s4 = inlined_call_operand.hbm [shape: f32[2,16,128], index: 4, kind: output, shape index: {2}]
  %5 = xla_tuple %s2, %s3, %s4
  %s6 = sld [smem:[#allocation0]]
  $region41: #{tpu_custom_call.1} parent=0
    _
  %s8 = ssub.s32 1, %s6
  %s9 = scalar_select 0, %s8, %s6
  $region1: #{tpu_custom_call.1} parent=0
    #allocation2 [shape = 'u8[1024]{0}', space=vmem, size = 0x400, scoped, tag = 'output window, operand 0, single buffered']
    #allocation3 [shape = 's32[1]{0}', space=sflag, size = 0x4, scoped, tag = 'scoped memory for tpu_custom_call.1']
    #allocation4 [shape = 'u8[16384]{0}', space=vmem, size = 0x4000, scoped, tag = 'output window, operand 1, single buffered']
    #allocation5 [shape = 's32[1]{0}', space=sflag, size = 0x4, scoped, tag = 'scoped memory for tpu_custom_call.1']
    #allocation6 [shape = 'u8[16384]{0}', space=vmem, size = 0x4000, scoped, tag = 'output window, operand 2, single buffered']
    %10 = vsyncpa [#allocation3], 0
    %11 = vsyncpa [#allocation5], 0
    // Predicated region
    $region2: #{tpu_custom_call.1} parent=1 // pred_check
      _
    $region3: #{tpu_custom_call.1} parent=1 // pred_check_branch
      %13 = sbr.rel (0) target = $region5
    $region4: #{tpu_custom_call.1} parent=1 // pred_region
      _
    $region5: #{tpu_custom_call.1} parent=1 // pred_fallthru
      _
    // Predicated region
    $region6: #{tpu_custom_call.1} parent=1 // pred_check
      _
    $region7: #{tpu_custom_call.1} parent=1 // pred_check_branch
      %15 = sbr.rel (0) target = $region9
    $region8: #{tpu_custom_call.1} parent=1 // pred_region
      _
    $region9: #{tpu_custom_call.1} parent=1 // pred_fallthru
      _
    %v16 = vld [vmem:[%s0] sm:$0xff]
    %v17 = vld [vmem:[%s0 + $0x8] sm:$0xff]
    %v18 = vld [vmem:[%s0 + $0x10] sm:$0xff]
    %v19 = vld [vmem:[%s0 + $0x18] sm:$0xff]
    %v20 = vld [vmem:[%s1] sm:$0xff]
    %v21 = vld [vmem:[%s1 + $0x8] sm:$0xff]
    %v22 = vld [vmem:[%s1 + $0x10] sm:$0xff]
    %v23 = vld [vmem:[%s1 + $0x18] sm:$0xff]
    %v24 = vld [vmem:[%s1 + $0x20] sm:$0xff]
    %v25 = vld [vmem:[%s1 + $0x28] sm:$0xff]
    %v26 = vld [vmem:[%s1 + $0x30] sm:$0xff]
    %v27 = vld [vmem:[%s1 + $0x38] sm:$0xff]
    %v28 = vld [vmem:[%s1 + $0x40] sm:$0xff]
    %v29 = vld [vmem:[%s1 + $0x48] sm:$0xff]
    %v30 = vld [vmem:[%s1 + $0x50] sm:$0xff]
    %v31 = vld [vmem:[%s1 + $0x58] sm:$0xff]
    %v32 = vld [vmem:[%s1 + $0x60] sm:$0xff]
    %v33 = vld [vmem:[%s1 + $0x68] sm:$0xff]
    %v34 = vld [vmem:[%s1 + $0x70] sm:$0xff]
    %v35 = vld [vmem:[%s1 + $0x78] sm:$0xff]
    %v36 = vld [vmem:[%s1 + $0x80] sm:$0xff]
    %v37 = vld [vmem:[%s1 + $0x88] sm:$0xff]
    %v38 = vld [vmem:[%s1 + $0x90] sm:$0xff]
    %v39 = vld [vmem:[%s1 + $0x98] sm:$0xff]
    %v40 = vld [vmem:[%s1 + $0xa0] sm:$0xff]
    %v41 = vld [vmem:[%s1 + $0xa8] sm:$0xff]
    %v42 = vld [vmem:[%s1 + $0xb0] sm:$0xff]
    %v43 = vld [vmem:[%s1 + $0xb8] sm:$0xff]
    %v44 = vld [vmem:[%s1 + $0xc0] sm:$0xff]
    %v45 = vld [vmem:[%s1 + $0xc8] sm:$0xff]
    %v46 = vld [vmem:[%s1 + $0xd0] sm:$0xff]
    %v47 = vld [vmem:[%s1 + $0xd8] sm:$0xff]
    %v48 = vld [vmem:[%s1 + $0xe0] sm:$0xff]
    %v49 = vld [vmem:[%s1 + $0xe8] sm:$0xff]
    %v50 = vld [vmem:[%s1 + $0xf0] sm:$0xff]
    %v51 = vld [vmem:[%s1 + $0xf8] sm:$0xff]
    %v52 = vlaneseq
    %v53 = vshrl.u32 %v52, 7
    %v54 = vadd.s32 %v53, 8
    %vm55 = vcmp.lt.s32.totalorder %v53, 16
    %vm56 = vcmp.lt.s32.totalorder %v54, 16
    %v57 = vlaneseq
    %v58 = vand.u32 %v57, 127
    %vm59 = vcmp.lt.s32.totalorder %v58, 16
    %v60 = vmul.f32 %v16, %v16
    %v61 = vmul.f32 %v17, %v17
    %v62 = vmul.f32 %v18, %v18
    %v63 = vmul.f32 %v19, %v19
    %vm64 = vcmask 64512
    %v65 = vsel %vm64, %v60, 0.0
    %66 = vadd.xlane.f32.xlu0 %v65
    %v67 = vpop.xlane.xlu0 %66
    %v68 = vsel %vm64, %v61, 0.0
    %69 = vadd.xlane.f32.xlu0 %v68
    %v70 = vpop.xlane.xlu0 %69
    %v71 = vsel %vm64, %v62, 0.0
    %72 = vadd.xlane.f32.xlu0 %v71
    %v73 = vpop.xlane.xlu0 %72
    %v74 = vsel %vm64, %v63, 0.0
    %75 = vadd.xlane.f32.xlu0 %v74
    %v76 = vpop.xlane.xlu0 %75
    %v77 = vmul.f32 %v20, %v20
    %v78 = vmul.f32 %v21, %v21
    %v79 = vmul.f32 %v22, %v22
    %v80 = vmul.f32 %v23, %v23
    %v81 = vmul.f32 %v24, %v24
    %v82 = vmul.f32 %v25, %v25
    %v83 = vmul.f32 %v26, %v26
    %v84 = vmul.f32 %v27, %v27
    %v85 = vmul.f32 %v28, %v28
    %v86 = vmul.f32 %v29, %v29
    %v87 = vmul.f32 %v30, %v30
    %v88 = vmul.f32 %v31, %v31
    %v89 = vmul.f32 %v32, %v32
    %v90 = vmul.f32 %v33, %v33
    %v91 = vmul.f32 %v34, %v34
    %v92 = vmul.f32 %v35, %v35
    %v93 = vmul.f32 %v36, %v36
    %v94 = vmul.f32 %v37, %v37
    %v95 = vmul.f32 %v38, %v38
    %v96 = vmul.f32 %v39, %v39
    %v97 = vmul.f32 %v40, %v40
    %v98 = vmul.f32 %v41, %v41
    %v99 = vmul.f32 %v42, %v42
    %v100 = vmul.f32 %v43, %v43
    %v101 = vmul.f32 %v44, %v44
    %v102 = vmul.f32 %v45, %v45
    %v103 = vmul.f32 %v46, %v46
    %v104 = vmul.f32 %v47, %v47
    %v105 = vmul.f32 %v48, %v48
    %v106 = vmul.f32 %v49, %v49
    %v107 = vmul.f32 %v50, %v50
    %v108 = vmul.f32 %v51, %v51
    %v109 = vsel %vm64, %v77, 0.0
    %110 = vadd.xlane.f32.xlu0 %v109
    %v111 = vpop.xlane.xlu0 %110
    %v112 = vsel %vm64, %v78, 0.0
    %113 = vadd.xlane.f32.xlu0 %v112
    %v114 = vpop.xlane.xlu0 %113
    %v115 = vsel %vm64, %v79, 0.0
    %116 = vadd.xlane.f32.xlu0 %v115
    %v117 = vpop.xlane.xlu0 %116
    %v118 = vsel %vm64, %v80, 0.0
    %119 = vadd.xlane.f32.xlu0 %v118
    %v120 = vpop.xlane.xlu0 %119
    %v121 = vsel %vm64, %v81, 0.0
    %122 = vadd.xlane.f32.xlu0 %v121
    %v123 = vpop.xlane.xlu0 %122
    %v124 = vsel %vm64, %v82, 0.0
    %125 = vadd.xlane.f32.xlu0 %v124
    %v126 = vpop.xlane.xlu0 %125
    %v127 = vsel %vm64, %v83, 0.0
    %128 = vadd.xlane.f32.xlu0 %v127
    %v129 = vpop.xlane.xlu0 %128
    %v130 = vsel %vm64, %v84, 0.0
    %131 = vadd.xlane.f32.xlu0 %v130
    %v132 = vpop.xlane.xlu0 %131
    %v133 = vsel %vm64, %v85, 0.0
    %134 = vadd.xlane.f32.xlu0 %v133
    %v135 = vpop.xlane.xlu0 %134
    %v136 = vsel %vm64, %v86, 0.0
    %137 = vadd.xlane.f32.xlu0 %v136
    %v138 = vpop.xlane.xlu0 %137
    %v139 = vsel %vm64, %v87, 0.0
    %140 = vadd.xlane.f32.xlu0 %v139
    %v141 = vpop.xlane.xlu0 %140
    %v142 = vsel %vm64, %v88, 0.0
    %143 = vadd.xlane.f32.xlu0 %v142
    %v144 = vpop.xlane.xlu0 %143
    %v145 = vsel %vm64, %v89, 0.0
    %146 = vadd.xlane.f32.xlu0 %v145
    %v147 = vpop.xlane.xlu0 %146
    %v148 = vsel %vm64, %v90, 0.0
    %149 = vadd.xlane.f32.xlu0 %v148
    %v150 = vpop.xlane.xlu0 %149
    %v151 = vsel %vm64, %v91, 0.0
    %152 = vadd.xlane.f32.xlu0 %v151
    %v153 = vpop.xlane.xlu0 %152
    %v154 = vsel %vm64, %v92, 0.0
    %155 = vadd.xlane.f32.xlu0 %v154
    %v156 = vpop.xlane.xlu0 %155
    %v157 = vsel %vm64, %v93, 0.0
    %158 = vadd.xlane.f32.xlu0 %v157
    %v159 = vpop.xlane.xlu0 %158
    %v160 = vsel %vm64, %v94, 0.0
    %161 = vadd.xlane.f32.xlu0 %v160
    %v162 = vpop.xlane.xlu0 %161
    %v163 = vsel %vm64, %v95, 0.0
    %164 = vadd.xlane.f32.xlu0 %v163
    %v165 = vpop.xlane.xlu0 %164
    %v166 = vsel %vm64, %v96, 0.0
    %167 = vadd.xlane.f32.xlu0 %v166
    %v168 = vpop.xlane.xlu0 %167
    %v169 = vsel %vm64, %v97, 0.0
    %170 = vadd.xlane.f32.xlu0 %v169
    %v171 = vpop.xlane.xlu0 %170
    %v172 = vsel %vm64, %v98, 0.0
    %173 = vadd.xlane.f32.xlu0 %v172
    %v174 = vpop.xlane.xlu0 %173
    %v175 = vsel %vm64, %v99, 0.0
    %176 = vadd.xlane.f32.xlu0 %v175
    %v177 = vpop.xlane.xlu0 %176
    %v178 = vsel %vm64, %v100, 0.0
    %179 = vadd.xlane.f32.xlu0 %v178
    %v180 = vpop.xlane.xlu0 %179
    %v181 = vsel %vm64, %v101, 0.0
    %182 = vadd.xlane.f32.xlu0 %v181
    %v183 = vpop.xlane.xlu0 %182
    %v184 = vsel %vm64, %v102, 0.0
    %185 = vadd.xlane.f32.xlu0 %v184
    %v186 = vpop.xlane.xlu0 %185
    %v187 = vsel %vm64, %v103, 0.0
    %188 = vadd.xlane.f32.xlu0 %v187
    %v189 = vpop.xlane.xlu0 %188
    %v190 = vsel %vm64, %v104, 0.0
    %191 = vadd.xlane.f32.xlu0 %v190
    %v192 = vpop.xlane.xlu0 %191
    %v193 = vsel %vm64, %v105, 0.0
    %194 = vadd.xlane.f32.xlu0 %v193
    %v195 = vpop.xlane.xlu0 %194
    %v196 = vsel %vm64, %v106, 0.0
    %197 = vadd.xlane.f32.xlu0 %v196
    %v198 = vpop.xlane.xlu0 %197
    %v199 = vsel %vm64, %v107, 0.0
    %200 = vadd.xlane.f32.xlu0 %v199
    %v201 = vpop.xlane.xlu0 %200
    %v202 = vsel %vm64, %v108, 0.0
    %203 = vadd.xlane.f32.xlu0 %v202
    %v204 = vpop.xlane.xlu0 %203
    %v206 = vsel %vm64, %v16, 0
    %v209 = vsel %vm64, %v17, 0
    %v212 = vsel %vm64, %v20, 0
    %v215 = vsel %vm64, %v21, 0
    %v218 = vsel %vm64, %v22, 0
    %v221 = vsel %vm64, %v23, 0
    %v224 = vsel %vm64, %v24, 0
    %v227 = vsel %vm64, %v25, 0
    %v230 = vsel %vm64, %v26, 0
    %v233 = vsel %vm64, %v27, 0
    %v236 = vsel %vm64, %v28, 0
    %v239 = vsel %vm64, %v29, 0
    %v242 = vsel %vm64, %v30, 0
    %v245 = vsel %vm64, %v31, 0
    %v248 = vsel %vm64, %v32, 0
    %v251 = vsel %vm64, %v33, 0
    %v254 = vsel %vm64, %v34, 0
    %v257 = vsel %vm64, %v35, 0
    %259 = vmatpush.xpose.msra.mxu0 %v257
    %260 = vmatpush.xpose.msra.mxu0 %v254
    %261 = vmatpush.xpose.msra.mxu0 %v251
    %262 = vmatpush.xpose.msra.mxu0 %v248
    %263 = vmatpush.xpose.msra.mxu0 %v245
    %264 = vmatpush.xpose.msra.mxu0 %v242
    %265 = vmatpush.xpose.msra.mxu0 %v239
    %266 = vmatpush.xpose.msra.mxu0 %v236
    %267 = vmatpush.xpose.msra.mxu0 %v233
    %268 = vmatpush.xpose.msra.mxu0 %v230
    %269 = vmatpush.xpose.msra.mxu0 %v227
    %270 = vmatpush.xpose.msra.mxu0 %v224
    %271 = vmatpush.xpose.msra.mxu0 %v221
    %272 = vmatpush.xpose.msra.mxu0 %v218
    %273 = vmatpush.xpose.msra.mxu0 %v215
    %274 = vmatpush.xpose.msra.mxu0 %v212
    %275 = vmatmul.f32.gmra.mxu0 %v206
    %v276 = vpop.f32.mrf.mxu0
    %v277 = vadd.f32 0.0, %v276
    %278 = vmatmul.f32.gmra.mxu0 %v209
    %v279 = vpop.f32.mrf.mxu0
    %v280 = vadd.f32 0.0, %v279
    %281 = vdwg.mxu0
    %v283 = vsel %vm64, %v18, 0
    %v286 = vsel %vm64, %v19, 0
    %v289 = vsel %vm64, %v36, 0
    %v292 = vsel %vm64, %v37, 0
    %v295 = vsel %vm64, %v38, 0
    %v298 = vsel %vm64, %v39, 0
    %v301 = vsel %vm64, %v40, 0
    %v304 = vsel %vm64, %v41, 0
    %v307 = vsel %vm64, %v42, 0
    %v310 = vsel %vm64, %v43, 0
    %v313 = vsel %vm64, %v44, 0
    %v316 = vsel %vm64, %v45, 0
    %v319 = vsel %vm64, %v46, 0
    %v322 = vsel %vm64, %v47, 0
    %v325 = vsel %vm64, %v48, 0
    %v328 = vsel %vm64, %v49, 0
    %v331 = vsel %vm64, %v50, 0
    %v334 = vsel %vm64, %v51, 0
    %336 = vmatpush.xpose.msra.mxu0 %v334
    %337 = vmatpush.xpose.msra.mxu0 %v331
    %338 = vmatpush.xpose.msra.mxu0 %v328
    %339 = vmatpush.xpose.msra.mxu0 %v325
    %340 = vmatpush.xpose.msra.mxu0 %v322
    %341 = vmatpush.xpose.msra.mxu0 %v319
    %342 = vmatpush.xpose.msra.mxu0 %v316
    %343 = vmatpush.xpose.msra.mxu0 %v313
    %344 = vmatpush.xpose.msra.mxu0 %v310
    %345 = vmatpush.xpose.msra.mxu0 %v307
    %346 = vmatpush.xpose.msra.mxu0 %v304
    %347 = vmatpush.xpose.msra.mxu0 %v301
    %348 = vmatpush.xpose.msra.mxu0 %v298
    %349 = vmatpush.xpose.msra.mxu0 %v295
    %350 = vmatpush.xpose.msra.mxu0 %v292
    %351 = vmatpush.xpose.msra.mxu0 %v289
    %352 = vmatmul.f32.gmra.mxu0 %v283
    %v353 = vpop.f32.mrf.mxu0
    %v354 = vadd.f32 0.0, %v353
    %355 = vmatmul.f32.gmra.mxu0 %v286
    %v356 = vpop.f32.mrf.mxu0
    %v357 = vadd.f32 0.0, %v356
    %358 = vdwg.mxu0
    %v391 = vperm.slane %v111, %v58
    %v392 = vadd.s32 %v58, 4294967288
    %v393 = vperm.slane %v114, %v392
    %vm394 = vcmask 130112
    %v395 = vsel %vm394, %v393, %v391
    %v396 = vadd.s32 %v58, 4294967280
    %v397 = vperm.slane %v117, %v396
    %vm398 = vcmask 195712
    %v399 = vsel %vm398, %v397, %v395
    %v400 = vadd.s32 %v58, 4294967272
    %v401 = vperm.slane %v120, %v400
    %vm402 = vcmask 261312
    %v403 = vsel %vm402, %v401, %v399
    %v404 = vadd.s32 %v58, 4294967264
    %v405 = vperm.slane %v123, %v404
    %vm406 = vcmask 326912
    %v407 = vsel %vm406, %v405, %v403
    %v408 = vadd.s32 %v58, 4294967256
    %v409 = vperm.slane %v126, %v408
    %vm410 = vcmask 392512
    %v411 = vsel %vm410, %v409, %v407
    %v412 = vadd.s32 %v58, 4294967248
    %v413 = vperm.slane %v129, %v412
    %vm414 = vcmask 458112
    %v415 = vsel %vm414, %v413, %v411
    %v416 = vadd.s32 %v58, 4294967240
    %v417 = vperm.slane %v132, %v416
    %vm418 = vcmask 523712
    %v419 = vsel %vm418, %v417, %v415
    %v420 = vadd.s32 %v58, 4294967232
    %v421 = vperm.slane %v135, %v420
    %vm422 = vcmask 589312
    %v423 = vsel %vm422, %v421, %v419
    %v424 = vadd.s32 %v58, 4294967224
    %v425 = vperm.slane %v138, %v424
    %vm426 = vcmask 654912
    %v427 = vsel %vm426, %v425, %v423
    %v428 = vadd.s32 %v58, 4294967216
    %v429 = vperm.slane %v141, %v428
    %vm430 = vcmask 720512
    %v431 = vsel %vm430, %v429, %v427
    %v432 = vadd.s32 %v58, 4294967208
    %v433 = vperm.slane %v144, %v432
    %vm434 = vcmask 786112
    %v435 = vsel %vm434, %v433, %v431
    %v436 = vadd.s32 %v58, 4294967200
    %v437 = vperm.slane %v147, %v436
    %vm438 = vcmask 851712
    %v439 = vsel %vm438, %v437, %v435
    %v440 = vadd.s32 %v58, 4294967192
    %v441 = vperm.slane %v150, %v440
    %vm442 = vcmask 917312
    %v443 = vsel %vm442, %v441, %v439
    %v444 = vadd.s32 %v58, 4294967184
    %v445 = vperm.slane %v153, %v444
    %vm446 = vcmask 982912
    %v447 = vsel %vm446, %v445, %v443
    %v448 = vadd.s32 %v58, 4294967176
    %v449 = vperm.slane %v156, %v448
    %vm450 = vcmask 1048512
    %v451 = vsel %vm450, %v449, %v447
    %v452 = vperm.slane %v159, %v58
    %v453 = vperm.slane %v162, %v392
    %v454 = vsel %vm394, %v453, %v452
    %v455 = vperm.slane %v165, %v396
    %v456 = vsel %vm398, %v455, %v454
    %v457 = vperm.slane %v168, %v400
    %v458 = vsel %vm402, %v457, %v456
    %v459 = vperm.slane %v171, %v404
    %v460 = vsel %vm406, %v459, %v458
    %v461 = vperm.slane %v174, %v408
    %v462 = vsel %vm410, %v461, %v460
    %v463 = vperm.slane %v177, %v412
    %v464 = vsel %vm414, %v463, %v462
    %v465 = vperm.slane %v180, %v416
    %v466 = vsel %vm418, %v465, %v464
    %v467 = vperm.slane %v183, %v420
    %v468 = vsel %vm422, %v467, %v466
    %v469 = vperm.slane %v186, %v424
    %v470 = vsel %vm426, %v469, %v468
    %v471 = vperm.slane %v189, %v428
    %v472 = vsel %vm430, %v471, %v470
    %v473 = vperm.slane %v192, %v432
    %v474 = vsel %vm434, %v473, %v472
    %v475 = vperm.slane %v195, %v436
    %v476 = vsel %vm438, %v475, %v474
    %v477 = vperm.slane %v198, %v440
    %v478 = vsel %vm442, %v477, %v476
    %v479 = vperm.slane %v201, %v444
    %v480 = vsel %vm446, %v479, %v478
    %v481 = vperm.slane %v204, %v448
    %v482 = vsel %vm450, %v481, %v480
    %vm483 = vcmask 1042434
    %v484 = vsel %vm483, %v451, %v451
    %vm485 = vcmask 1043459
    %v486 = vsel %vm485, %v451, %v484
    %vm487 = vcmask 1044484
    %v488 = vsel %vm487, %v451, %v486
    %vm489 = vcmask 1045509
    %v490 = vsel %vm489, %v451, %v488
    %vm491 = vcmask 1046534
    %v492 = vsel %vm491, %v451, %v490
    %vm493 = vcmask 1047559
    %v494 = vsel %vm493, %v451, %v492
    %v495 = vsel %vm483, %v482, %v482
    %v496 = vsel %vm485, %v482, %v495
    %v497 = vsel %vm487, %v482, %v496
    %v498 = vsel %vm489, %v482, %v497
    %v499 = vsel %vm491, %v482, %v498
    %v500 = vsel %vm493, %v482, %v499
    %v503 = vadd.f32 %v67, %v494
    %v504 = vadd.f32 %v70, %v494
    %v505 = vadd.f32 %v73, %v500
    %v506 = vadd.f32 %v76, %v500
    %v507 = vmul.f32 %v277, 2.0
    %v508 = vmul.f32 %v280, 2.0
    %v509 = vmul.f32 %v354, 2.0
    %v510 = vmul.f32 %v357, 2.0
    %v511 = vsub.f32 %v503, %v507
    %v512 = vsub.f32 %v504, %v508
    %v513 = vsub.f32 %v505, %v509
    %v514 = vsub.f32 %v506, %v510
    %v515 = vmax.f32 %v511, 0.0
    %v516 = vmax.f32 %v512, 0.0
    %v517 = vmax.f32 %v513, 0.0
    %v518 = vmax.f32 %v514, 0.0
    %519 = vst [vmem:[#allocation6] sm:$0xff] %v515
    %520 = vst [vmem:[#allocation6 + $0x8] sm:$0xff] %v516
    %521 = vst [vmem:[#allocation6 + $0x10] sm:$0xff] %v517
    %522 = vst [vmem:[#allocation6 + $0x18] sm:$0xff] %v518
    %v523 = vsub.f32 0.0, %v515
    %v524 = vsub.f32 0.0, %v516
    %v525 = vsub.f32 0.0, %v517
    %v526 = vsub.f32 0.0, %v518
    %v527 = vmul.f32 %v523, 10.0
    %v528 = vmul.f32 %v524, 10.0
    %v529 = vmul.f32 %v525, 10.0
    %v530 = vmul.f32 %v526, 10.0
    %v531 = vsel %vm55, 1, 0
    %v532 = vsel %vm56, 1, 0
    %vm533 = vcmp.eq.s32.totalorder %v531, 1
    %vm534 = vcmp.eq.s32.totalorder %v532, 1
    %v535 = vsel %vm59, 1, 0
    %vm536 = vcmp.eq.s32.totalorder %v535, 1
    %vm537 = vmand %vm533, %vm536
    %vm538 = vmand %vm534, %vm536
    %v539 = vsel %vm537, 1, 0
    %v540 = vsel %vm538, 1, 0
    %vm541 = vcmp.eq.s32.totalorder %v539, 1
    %vm542 = vcmp.eq.s32.totalorder %v540, 1
    %v543 = vsel %vm541, %v527, -1e+30
    %v544 = vsel %vm542, %v528, -1e+30
    %v545 = vsel %vm541, %v529, -1e+30
    %v546 = vsel %vm542, %v530, -1e+30
    // While loop
    $region10: #{tpu_custom_call.1} parent=1 // loop_pre_header
      _
    $region11: #{tpu_custom_call.1} parent=1 // loop_header
      %s548 = sphi 0, %s690
      %v549 = vphi 0.0, %v606
      %v550 = vphi 0.0, %v607
      %v551 = vphi 0.0, %v608
      %v552 = vphi 0.0, %v609
      %v553 = vphi 0.0, %v662
      %v554 = vphi 0.0, %v663
      %s555 = sphi 1e+30, %s689
      %p556 = scmp.lt.s32.totalorder %s548, 50
      %p557 = scmp.ge.f32.partialorder %s555, 0.1
      %p558 = pnand %p556, %p557
      %p559 = pneg %p558
    $region12: #{tpu_custom_call.1} parent=1 // loop_header_branch
      %561 = sbr.rel (%p558) target = $region16
    $region13: #{tpu_custom_call.1} parent=1 // loop_body
      %v562 = vadd.f32 %v543, %v553
      %v563 = vadd.f32 %v544, %v553
      %v564 = vadd.f32 %v545, %v554
      %v565 = vadd.f32 %v546, %v554
      %566 = vmax.xlane.f32.xlu0 %v562
      %v567 = vpop.xlane.xlu0 %566
      %568 = vmax.xlane.f32.xlu0 %v563
      %v569 = vpop.xlane.xlu0 %568
      %570 = vmax.xlane.f32.xlu0 %v564
      %v571 = vpop.xlane.xlu0 %570
      %572 = vmax.xlane.f32.xlu0 %v565
      %v573 = vpop.xlane.xlu0 %572
      %v574 = vsub.f32 %v562, %v567
      %v575 = vsub.f32 %v563, %v569
      %v576 = vsub.f32 %v564, %v571
      %v577 = vsub.f32 %v565, %v573
      %v578 = vmul.f32 %v574, 1.442695
      %v579 = vpow.pop %v578
      %v580 = vmul.f32 %v575, 1.442695
      %v581 = vpow.pop %v580
      %v582 = vmul.f32 %v576, 1.442695
      %v583 = vpow.pop %v582
      %v584 = vmul.f32 %v577, 1.442695
      %v585 = vpow.pop %v584
      %586 = vadd.xlane.f32.xlu0 %v579
      %v587 = vpop.xlane.xlu0 %586
      %588 = vadd.xlane.f32.xlu0 %v581
      %v589 = vpop.xlane.xlu0 %588
      %590 = vadd.xlane.f32.xlu0 %v583
      %v591 = vpop.xlane.xlu0 %590
      %592 = vadd.xlane.f32.xlu0 %v585
      %v593 = vpop.xlane.xlu0 %592
      %v594 = vlog2.pop %v587
      %v595 = vmul.f32 %v594, 0.6931472
      %v596 = vlog2.pop %v589
      %v597 = vmul.f32 %v596, 0.6931472
      %v598 = vlog2.pop %v591
      %v599 = vmul.f32 %v598, 0.6931472
      %v600 = vlog2.pop %v593
      %v601 = vmul.f32 %v600, 0.6931472
      %v602 = vadd.f32 %v595, %v567
      %v603 = vadd.f32 %v597, %v569
      %v604 = vadd.f32 %v599, %v571
      %v605 = vadd.f32 %v601, %v573
      %v606 = vsub.f32 -2.7725885, %v602
      %v607 = vsub.f32 -2.7725885, %v603
      %v608 = vsub.f32 -2.7725885, %v604
      %v609 = vsub.f32 -2.7725885, %v605
      %v610 = vadd.f32 %v543, %v606
      %v611 = vadd.f32 %v544, %v607
      %v612 = vadd.f32 %v545, %v608
      %v613 = vadd.f32 %v546, %v609
      %v614 = vmax.f32 %v610, %v611
      %v615 = vrot.slane %v614, 4
      %v616 = vmax.f32 %v614, %v615
      %v617 = vrot.slane %v616, 2
      %v618 = vmax.f32 %v616, %v617
      %v619 = vrot.slane %v618, 1
      %v620 = vmax.f32 %v618, %v619
      %v621 = vmax.f32 %v612, %v613
      %v622 = vrot.slane %v621, 4
      %v623 = vmax.f32 %v621, %v622
      %v624 = vrot.slane %v623, 2
      %v625 = vmax.f32 %v623, %v624
      %v626 = vrot.slane %v625, 1
      %v627 = vmax.f32 %v625, %v626
      %v628 = vsub.f32 %v610, %v620
      %v629 = vsub.f32 %v611, %v620
      %v630 = vsub.f32 %v612, %v627
      %v631 = vsub.f32 %v613, %v627
      %v632 = vmul.f32 %v628, 1.442695
      %v633 = vpow.pop %v632
      %v634 = vmul.f32 %v629, 1.442695
      %v635 = vpow.pop %v634
      %v636 = vmul.f32 %v630, 1.442695
      %v637 = vpow.pop %v636
      %v638 = vmul.f32 %v631, 1.442695
      %v639 = vpow.pop %v638
      %v640 = vadd.f32 %v633, %v635
      %v641 = vrot.slane %v640, 4
      %v642 = vadd.f32 %v640, %v641
      %v643 = vrot.slane %v642, 2
      %v644 = vadd.f32 %v642, %v643
      %v645 = vrot.slane %v644, 1
      %v646 = vadd.f32 %v644, %v645
      %v647 = vadd.f32 %v637, %v639
      %v648 = vrot.slane %v647, 4
      %v649 = vadd.f32 %v647, %v648
      %v650 = vrot.slane %v649, 2
      %v651 = vadd.f32 %v649, %v650
      %v652 = vrot.slane %v651, 1
      %v653 = vadd.f32 %v651, %v652
      %v654 = vlog2.pop %v646
      %v655 = vmul.f32 %v654, 0.6931472
      %v656 = vlog2.pop %v653
      %v657 = vmul.f32 %v656, 0.6931472
      %v658 = vadd.f32 %v655, %v620
      %v659 = vadd.f32 %v657, %v627
      %v660 = vsub.f32 -2.7725885, %v658
      %v661 = vsub.f32 -2.7725885, %v659
      %v662 = vsel %vm536, %v660, 0.0
      %v663 = vsel %vm536, %v661, 0.0
      %v664 = vsub.f32 %v606, %v549
      %v665 = vsub.f32 %v607, %v550
      %v666 = vsub.f32 %v608, %v551
      %v667 = vsub.f32 %v609, %v552
      %v668 = vand.u32 2147483647, %v664
      %v669 = vand.u32 2147483647, %v665
      %v670 = vand.u32 2147483647, %v666
      %v671 = vand.u32 2147483647, %v667
      %vm672 = vcmask 7168
      %v673 = vsel %vm672, %v668, 0.0
      %v674 = vsel %vm672, %v669, 0.0
      %v675 = vadd.f32 %v673, %v674
      %v676 = vsel %vm672, %v670, 0.0
      %v677 = vadd.f32 %v675, %v676
      %v678 = vsel %vm672, %v671, 0.0
      %v679 = vadd.f32 %v677, %v678
      %680 = vadd.xlane.f32.xlu0 %v679
      %v681 = vpop.xlane.xlu0 %680
      %v682 = vrot.slane %v681, 4
      %v683 = vadd.f32 %v681, %v682
      %v684 = vrot.slane %v683, 2
      %v685 = vadd.f32 %v683, %v684
      %v686 = vrot.slane %v685, 1
      %v687 = vadd.f32 %v685, %v686
      %s688 = vtos %v687
      %s689 = smul.f32 %s688, 0.05
      %s690 = sadd.s32 %s548, 1
    $region14: #{tpu_custom_call.1} parent=1 // loop_footer
      _
    $region15: #{tpu_custom_call.1} parent=1 // loop_footer_branch
      %547 = sbr.rel target = $region11
    $region16: #{tpu_custom_call.1} parent=1 // loop_exit
      _
    %v691 = vadd.f32 %v543, %v549
    %v692 = vadd.f32 %v544, %v550
    %v693 = vadd.f32 %v545, %v551
    %v694 = vadd.f32 %v546, %v552
    %v695 = vadd.f32 %v691, %v553
    %v696 = vadd.f32 %v692, %v553
    %v697 = vadd.f32 %v693, %v554
    %v698 = vadd.f32 %v694, %v554
    %v699 = vmul.f32 %v695, 1.442695
    %v700 = vpow.pop %v699
    %v701 = vmul.f32 %v696, 1.442695
    %v702 = vpow.pop %v701
    %v703 = vmul.f32 %v697, 1.442695
    %v704 = vpow.pop %v703
    %v705 = vmul.f32 %v698, 1.442695
    %v706 = vpow.pop %v705
    %707 = vst [vmem:[#allocation4] sm:$0xff] %v700
    %708 = vst [vmem:[#allocation4 + $0x8] sm:$0xff] %v702
    %709 = vst [vmem:[#allocation4 + $0x10] sm:$0xff] %v704
    %710 = vst [vmem:[#allocation4 + $0x18] sm:$0xff] %v706
    %v711 = vld [vmem:[#allocation6] sm:$0xff]
    %v712 = vld [vmem:[#allocation6 + $0x8] sm:$0xff]
    %v713 = vld [vmem:[#allocation6 + $0x10] sm:$0xff]
    %v714 = vld [vmem:[#allocation6 + $0x18] sm:$0xff]
    %v715 = vmul.f32 %v700, %v711
    %v716 = vmul.f32 %v702, %v712
    %v717 = vmul.f32 %v704, %v713
    %v718 = vmul.f32 %v706, %v714
    %719 = vadd.xlane.f32.xlu0 %v715
    %v720 = vpop.xlane.xlu0 %719
    %721 = vadd.xlane.f32.xlu0 %v716
    %v722 = vpop.xlane.xlu0 %721
    %723 = vadd.xlane.f32.xlu0 %v717
    %v724 = vpop.xlane.xlu0 %723
    %725 = vadd.xlane.f32.xlu0 %v718
    %v726 = vpop.xlane.xlu0 %725
    %v727 = vadd.f32 %v720, %v722
    %v728 = vrot.slane %v727, 4
    %v729 = vadd.f32 %v727, %v728
    %v730 = vrot.slane %v729, 2
    %v731 = vadd.f32 %v729, %v730
    %v732 = vrot.slane %v731, 1
    %v733 = vadd.f32 %v731, %v732
    %v734 = vadd.f32 %v724, %v726
    %v735 = vrot.slane %v734, 4
    %v736 = vadd.f32 %v734, %v735
    %v737 = vrot.slane %v736, 2
    %v738 = vadd.f32 %v736, %v737
    %v739 = vrot.slane %v738, 1
    %v740 = vadd.f32 %v738, %v739
    %741 = vst [vmem:[#allocation2] sm:$0x1] %v733
    %742 = vst [vmem:[#allocation2 + $0x1] sm:$0x1] %v740
    // Predicated region
    $region17: #{tpu_custom_call.1} parent=1 // pred_check
      _
    $region18: #{tpu_custom_call.1} parent=1 // pred_check_branch
      %744 = sbr.rel (0) target = $region20
    $region19: #{tpu_custom_call.1} parent=1 // pred_region
      %746 = vsyncadd [#allocation3], 0
      %s747 = sshll.u32 [#allocation2], 4
      %s748 = int_to_ptr.vmem [resolvable:$true] %s747
      %s749 = sshll.u32 %s2, 4
      %s750 = int_to_ptr.hbm [resolvable:$true] %s749
      %755 = dma.vmem_to_hbm [thread:$0]  %s748, 32, %s750, [#allocation3], 16, 16, 1
    $region20: #{tpu_custom_call.1} parent=1 // pred_fallthru
      _
    // Predicated region
    $region21: #{tpu_custom_call.1} parent=1 // pred_check
      _
    $region22: #{tpu_custom_call.1} parent=1 // pred_check_branch
      %757 = sbr.rel (0) target = $region24
    $region23: #{tpu_custom_call.1} parent=1 // pred_region
      %759 = vsyncadd [#allocation5], 0
      %s760 = sshll.u32 [#allocation4], 4
      %s761 = int_to_ptr.vmem [resolvable:$true] %s760
      %s762 = sshll.u32 %s3, 4
      %s763 = int_to_ptr.hbm [resolvable:$true] %s762
      %768 = dma.vmem_to_hbm [thread:$0]  %s761, 512, %s763, [#allocation5], 128, 128, 8
    $region24: #{tpu_custom_call.1} parent=1 // pred_fallthru
      _
    // Predicated region
    $region25: #{tpu_custom_call.1} parent=1 // pred_check
      _
    $region26: #{tpu_custom_call.1} parent=1 // pred_check_branch
      %770 = sbr.rel (0) target = $region28
    $region27: #{tpu_custom_call.1} parent=1 // pred_region
      %772 = vsyncadd [#allocation5], 0
      %s773 = sshll.u32 [#allocation6], 4
      %s774 = int_to_ptr.vmem [resolvable:$true] %s773
      %s775 = sshll.u32 %s4, 4
      %s776 = int_to_ptr.hbm [resolvable:$true] %s775
      %781 = dma.vmem_to_hbm [thread:$0]  %s774, 512, %s776, [#allocation5], 128, 128, 8
    $region28: #{tpu_custom_call.1} parent=1 // pred_fallthru
      _
    // Predicated region
    $region29: #{tpu_custom_call.1} parent=1 // pred_check
      _
    $region30: #{tpu_custom_call.1} parent=1 // pred_check_branch
      %783 = sbr.rel (0) target = $region32
    $region31: #{tpu_custom_call.1} parent=1 // pred_region
      %785 = dma.done [#allocation3], 32
    $region32: #{tpu_custom_call.1} parent=1 // pred_fallthru
      _
    // Predicated region
    $region33: #{tpu_custom_call.1} parent=1 // pred_check
      _
    $region34: #{tpu_custom_call.1} parent=1 // pred_check_branch
      %787 = sbr.rel (0) target = $region36
    $region35: #{tpu_custom_call.1} parent=1 // pred_region
      %789 = dma.done [#allocation5], 512
    $region36: #{tpu_custom_call.1} parent=1 // pred_fallthru
      _
    // Predicated region
    $region37: #{tpu_custom_call.1} parent=1 // pred_check
      _
    $region38: #{tpu_custom_call.1} parent=1 // pred_check_branch
      %791 = sbr.rel (0) target = $region40
    $region39: #{tpu_custom_call.1} parent=1 // pred_region
      %793 = dma.done [#allocation5], 512
    $region40: #{tpu_custom_call.1} parent=1 // pred_fallthru
      _
    %794 = vsyncpa [#allocation3], 1
    %795 = vsyncpa [#allocation5], 1

</llo_original>
